<compile_context>
chip_gen: v5e
topology: v5e:2x2
jax: 0.10.0
libtpu: 0.0.40
codegen_flags: <defaults>
</compile_context>

<pallas_src>
import math
import functools
import operator

import jax
import jax.numpy as jnp
from jax import lax
from jax.experimental import pallas as pl
from jax.experimental.pallas import tpu as pltpu


# ---------------------------------------------------------------------------
# Host-side coefficient construction (exact semantics of the PyTorch helpers).
# ---------------------------------------------------------------------------
def rising_factorial(z, m):
    # Mirrors the reference implementation exactly (including the
    # negative-integer short-circuit) to keep module semantics identical.
    if m == 0:
        return 1
    if z < 0 and z % 1 == 0:
        return 0
    return math.gamma(z + m) / math.gamma(z)


def make_series_coeffs(upper, lower, N):
    """c_k = prod_up (a)_k / k! / prod_low (b)_k  for k = 0..N-1."""
    upper_coeffs = [
        functools.reduce(operator.mul, [rising_factorial(a, k) for a in upper], 1)
        / math.factorial(k)
        for k in range(N)
    ]
    lower_coeffs = [
        functools.reduce(operator.mul, [rising_factorial(b, k) for b in lower], 1)
        for k in range(N)
    ]
    return [u / l for u, l in zip(upper_coeffs, lower_coeffs)]


def _round_up(a, b):
    return ((a + b - 1) // b) * b


# ---------------------------------------------------------------------------
# Pallas kernel: register-resident cos -> Horner -> store, per row sub-chunk.
# ---------------------------------------------------------------------------
def _fractional_y0_kernel_factory(coeffs, inner_rows, num_chunks):
    """Coefficients (prefactor already folded in) are compile-time constants."""
    N = len(coeffs)

    def kernel(theta_ref, o_ref):
        def chunk(c, carry):
            r0 = pl.multiple_of(c * inner_rows, inner_rows)
            theta = theta_ref[pl.ds(r0, inner_rows), :].astype(jnp.float32)
            # TODO(synk): on v5e/v6e a bounded-domain minimax polynomial for
            # (1 - cos(theta))/2 would trim the generic cos range reduction,
            # but theta is unbounded in the module spec, so jnp.cos is kept.
            x = (1.0 - jnp.cos(theta)) * 0.5
            # Horner: p(x) = (((c_{N-1} x + c_{N-2}) x + ...) x + c_0)
            acc = jnp.full_like(x, jnp.float32(coeffs[N - 1]))
            for k in range(N - 2, -1, -1):
                acc = acc * x + jnp.float32(coeffs[k])
            o_ref[pl.ds(r0, inner_rows), :] = acc.astype(o_ref.dtype)
            return carry

        # Fully unrolled: short fixed trip-count, gives the LLO scheduler
        # visibility while bounding live ranges to one (inner_rows, lanes) slab.
        lax.fori_loop(0, num_chunks, chunk, 0, unroll=True)

    return kernel


def fractional_y0_pallas(theta, degree, N=20, *, lanes=256, max_tile_rows=2048):
    """Pallas implementation of FractionalY0(degree, N).forward(theta)."""
    coeffs = make_series_coeffs([-degree, degree + 1.0], [1.0], N)
    prefactor = math.sqrt((2.0 * degree + 1.0) / (4.0 * math.pi))
    coeffs = [prefactor * c for c in coeffs]        # fold the scale into c_k
    assert all(math.isfinite(c) for c in coeffs), "non-finite series coefficients"

    orig_shape = theta.shape
    out_dtype = theta.dtype
    total = theta.size

    flat = theta.reshape(-1)
    rows = max(pl.cdiv(total, lanes), 1)

    # Balanced tiling: padding capped at <8 rows per tile, and at least 2 tiles
    # whenever possible so ("parallel",) can shard rows across both v7x cores.
    num_tiles = pl.cdiv(rows, max_tile_rows)
    if num_tiles == 1 and rows >= 16:
        num_tiles = 2
    tile_rows = _round_up(pl.cdiv(rows, num_tiles), 8)
    num_tiles = pl.cdiv(rows, tile_rows)
    rows_padded = num_tiles * tile_rows
    padded_total = rows_padded * lanes

    # Pad / slice only when the flat size is not already tile-divisible
    # (they are full HBM passes outside the kernel).
    if padded_total != total:
        # Padding angles with 0 is harmless: the padded region is sliced off.
        flat = jnp.pad(flat, (0, padded_total - total))
    x2 = flat.reshape(rows_padded, lanes)

    # Inner sub-chunk size: largest of {32,16,8} dividing tile_rows.
    # 32 x 256 f32 = 8 vregs per live value -> cos + Horner stay in registers.
    if tile_rows % 32 == 0:
        inner_rows = 32
    elif tile_rows % 16 == 0:
        inner_rows = 16
    else:
        inner_rows = 8
    num_chunks = tile_rows // inner_rows

    kernel = _fractional_y0_kernel_factory(coeffs, inner_rows, num_chunks)

    bytes_in = padded_total * x2.dtype.itemsize
    bytes_out = padded_total * jnp.dtype(out_dtype).itemsize
    cost = pl.CostEstimate(
        flops=(2 * (N - 1) + 2) * padded_total,
        transcendentals=padded_total,
        bytes_accessed=bytes_in + bytes_out,
    )

    out = pl.pallas_call(
        kernel,
        out_shape=jax.ShapeDtypeStruct((rows_padded, lanes), out_dtype),
        grid=(num_tiles,),
        in_specs=[pl.BlockSpec((tile_rows, lanes), lambda i: (i, 0))],
        out_specs=pl.BlockSpec((tile_rows, lanes), lambda i: (i, 0)),
        compiler_params=pltpu.CompilerParams(
            dimension_semantics=("parallel",),
        ),
        cost_estimate=cost,
    )(x2)

    out_flat = out.reshape(-1)
    if padded_total != total:
        out_flat = out_flat[:total]
    return out_flat.reshape(orig_shape)


# ---------------------------------------------------------------------------
# Pure-JAX reference mirroring the PyTorch forward term-by-term.
# ---------------------------------------------------------------------------
def fractional_y0_ref(theta, degree, N=20):
    upper = [-degree, degree + 1.0]
    lower = [1.0]
    upper_coeffs = jnp.asarray(
        [
            functools.reduce(operator.mul, [rising_factorial(a, k) for a in upper], 1)
            / math.factorial(k)
            for k in range(N)
        ],
        dtype=jnp.float32,
    )
    lower_coeffs = jnp.asarray(
        [
            functools.reduce(operator.mul, [rising_factorial(b, k) for b in lower], 1)
            for k in range(N)
        ],
        dtype=jnp.float32,
    )
    x = (1.0 - jnp.cos(theta)) / 2.0
    expx = x[..., None] ** jnp.arange(N)
    s2 = upper_coeffs * expx / lower_coeffs
    hyp = jnp.sum(s2, axis=-1)
    return math.sqrt((2.0 * degree + 1.0) / (4.0 * math.pi)) * hyp


if __name__ == "__main__":
    # Fractional degree (the whole point of FractionalY0); integer degrees
    # would zero the series tail per the reference helper.
    degree = 0.5
    N = 20

    key = jax.random.PRNGKey(0)
    theta = jax.random.uniform(
        key, (2, 4, 16, 16), dtype=jnp.float32, minval=0.0, maxval=math.pi
    )

    y = fractional_y0_pallas(theta, degree, N)
    y = jax.block_until_ready(y)

    y_ref = fractional_y0_ref(theta, degree, N)
    assert y.shape == theta.shape
    assert jnp.allclose(y, y_ref, rtol=1e-4, atol=2e-5), "mismatch vs reference"

    print("KERNEL_OK")
</pallas_src>

<mosaic_0001>
module attributes {stable_mosaic.version = 11 : i64} {
  func.func @kernel(%arg0: i32, %arg1: memref<8x256xf32, #tpu.memory_space<vmem>>, %arg2: memref<8x256xf32, #tpu.memory_space<vmem>>) attributes {dimension_semantics = [#tpu.dimension_semantics<parallel>], iteration_bounds = array<i64: 1>, scalar_prefetch = 0 : i64, scratch_operands = 0 : i64, tpu.core_type = #tpu.core_type<tc>, window_params = [{transform_indices = @transform_0, window_bounds = array<i64: 8, 256>}, {transform_indices = @transform_1, window_bounds = array<i64: 8, 256>}]} {
    %c0_i32 = arith.constant 0 : i32
    %c8_i32 = arith.constant 8 : i32
    %0 = arith.muli %c0_i32, %c8_i32 : i32
    %1 = tpu.assume_multiple %0, 8 : i32
    %2 = arith.index_cast %1 : i32 to index
    %c0 = arith.constant 0 : index
    %3 = vector.load %arg1[%2, %c0] : memref<8x256xf32, #tpu.memory_space<vmem>>, vector<8x256xf32>
    %4 = math.cos %3 : vector<8x256xf32>
    %cst = arith.constant 1.000000e+00 : f32
    %5 = vector.broadcast %cst : f32 to vector<8x256xf32>
    %6 = arith.subf %5, %4 : vector<8x256xf32>
    %cst_0 = arith.constant 5.000000e-01 : f32
    %7 = vector.broadcast %cst_0 : f32 to vector<8x256xf32>
    %8 = arith.mulf %6, %7 : vector<8x256xf32>
    %cst_1 = arith.constant -0.00695273606 : f32
    %9 = vector.broadcast %cst_1 : f32 to vector<8x256xf32>
    %10 = arith.mulf %9, %8 : vector<8x256xf32>
    %cst_2 = arith.constant -0.00735512888 : f32
    %11 = vector.broadcast %cst_2 : f32 to vector<8x256xf32>
    %12 = arith.addf %10, %11 : vector<8x256xf32>
    %13 = arith.mulf %12, %8 : vector<8x256xf32>
    %cst_3 = arith.constant -0.00780691812 : f32
    %14 = vector.broadcast %cst_3 : f32 to vector<8x256xf32>
    %15 = arith.addf %13, %14 : vector<8x256xf32>
    %16 = arith.mulf %15, %8 : vector<8x256xf32>
    %cst_4 = arith.constant -0.00831778533 : f32
    %17 = vector.broadcast %cst_4 : f32 to vector<8x256xf32>
    %18 = arith.addf %16, %17 : vector<8x256xf32>
    %19 = arith.mulf %18, %8 : vector<8x256xf32>
    %cst_5 = arith.constant -0.00890011712 : f32
    %20 = vector.broadcast %cst_5 : f32 to vector<8x256xf32>
    %21 = arith.addf %19, %20 : vector<8x256xf32>
    %22 = arith.mulf %21, %8 : vector<8x256xf32>
    %cst_6 = arith.constant -0.00957001839 : f32
    %23 = vector.broadcast %cst_6 : f32 to vector<8x256xf32>
    %24 = arith.addf %22, %23 : vector<8x256xf32>
    %25 = arith.mulf %24, %8 : vector<8x256xf32>
    %cst_7 = arith.constant -0.0103488201 : f32
    %26 = vector.broadcast %cst_7 : f32 to vector<8x256xf32>
    %27 = arith.addf %25, %26 : vector<8x256xf32>
    %28 = arith.mulf %27, %8 : vector<8x256xf32>
    %cst_8 = arith.constant -0.0112653822 : f32
    %29 = vector.broadcast %cst_8 : f32 to vector<8x256xf32>
    %30 = arith.addf %28, %29 : vector<8x256xf32>
    %31 = arith.mulf %30, %8 : vector<8x256xf32>
    %cst_9 = arith.constant -0.0123597337 : f32
    %32 = vector.broadcast %cst_9 : f32 to vector<8x256xf32>
    %33 = arith.addf %31, %32 : vector<8x256xf32>
    %34 = arith.mulf %33, %8 : vector<8x256xf32>
    %cst_10 = arith.constant -0.0136890411 : f32
    %35 = vector.broadcast %cst_10 : f32 to vector<8x256xf32>
    %36 = arith.addf %34, %35 : vector<8x256xf32>
    %37 = arith.mulf %36, %8 : vector<8x256xf32>
    %cst_11 = arith.constant -0.0153378611 : f32
    %38 = vector.broadcast %cst_11 : f32 to vector<8x256xf32>
    %39 = arith.addf %37, %38 : vector<8x256xf32>
    %40 = arith.mulf %39, %8 : vector<8x256xf32>
    %cst_12 = arith.constant -0.017436726 : f32
    %41 = vector.broadcast %cst_12 : f32 to vector<8x256xf32>
    %42 = arith.addf %40, %41 : vector<8x256xf32>
    %43 = arith.mulf %42, %8 : vector<8x256xf32>
    %cst_13 = arith.constant -2.019820e-02 : f32
    %44 = vector.broadcast %cst_13 : f32 to vector<8x256xf32>
    %45 = arith.addf %43, %44 : vector<8x256xf32>
    %46 = arith.mulf %45, %8 : vector<8x256xf32>
    %cst_14 = arith.constant -0.0239930116 : f32
    %47 = vector.broadcast %cst_14 : f32 to vector<8x256xf32>
    %48 = arith.addf %46, %47 : vector<8x256xf32>
    %49 = arith.mulf %48, %8 : vector<8x256xf32>
    %cst_15 = arith.constant -0.0295298621 : f32
    %50 = vector.broadcast %cst_15 : f32 to vector<8x256xf32>
    %51 = arith.addf %49, %50 : vector<8x256xf32>
    %52 = arith.mulf %51, %8 : vector<8x256xf32>
    %cst_16 = arith.constant -0.0383504704 : f32
    %53 = vector.broadcast %cst_16 : f32 to vector<8x256xf32>
    %54 = arith.addf %52, %53 : vector<8x256xf32>
    %55 = arith.mulf %54, %8 : vector<8x256xf32>
    %cst_17 = arith.constant -0.0545428917 : f32
    %56 = vector.broadcast %cst_17 : f32 to vector<8x256xf32>
    %57 = arith.addf %55, %56 : vector<8x256xf32>
    %58 = arith.mulf %57, %8 : vector<8x256xf32>
    %cst_18 = arith.constant -0.0935020968 : f32
    %59 = vector.broadcast %cst_18 : f32 to vector<8x256xf32>
    %60 = arith.addf %58, %59 : vector<8x256xf32>
    %61 = arith.mulf %60, %8 : vector<8x256xf32>
    %cst_19 = arith.constant -0.299206704 : f32
    %62 = vector.broadcast %cst_19 : f32 to vector<8x256xf32>
    %63 = arith.addf %61, %62 : vector<8x256xf32>
    %64 = arith.mulf %63, %8 : vector<8x256xf32>
    %cst_20 = arith.constant 0.398942292 : f32
    %65 = vector.broadcast %cst_20 : f32 to vector<8x256xf32>
    %66 = arith.addf %64, %65 : vector<8x256xf32>
    %67 = arith.index_cast %1 : i32 to index
    %c0_21 = arith.constant 0 : index
    %68 = vector.load %arg2[%67, %c0_21] : memref<8x256xf32, #tpu.memory_space<vmem>>, vector<8x256xf32>
    tpu.vector_store %arg2[%67, %c0_21], %66 {strides = array<i32>} : memref<8x256xf32, #tpu.memory_space<vmem>>, vector<8x256xf32>,
    %c1_i32 = arith.constant 1 : i32
    return
  }
  func.func @transform_0(%arg0: i32) -> (i32, i32) {
    %c0_i32 = arith.constant 0 : i32
    %c0_i32_0 = arith.constant 0 : i32
    return %arg0, %c0_i32 : i32, i32
  }
  func.func @transform_1(%arg0: i32) -> (i32, i32) {
    %c0_i32 = arith.constant 0 : i32
    %c0_i32_0 = arith.constant 0 : i32
    return %arg0, %c0_i32 : i32, i32
  }
}

</mosaic_0001>

<llo_original>
// kernel: tpu_custom_call.1
$region0: #{tpu_custom_call.1}
  #allocation0 [shape = 'u32[]', space=smem, size = 0x4, offset = 0x4, fixed_abs, tag = 'smem constant byte address 0x4 - core index']
  #allocation1 [shape = 'u32[72,128]{1,0:T(1,128)}', space=vmem, size = 0x9000, scoped, tag = 'internal scratch']
  %s0 = inlined_call_operand.hbm [shape: f32[8,256], index: 0, kind: input, shape index: {}]
  %s1 = inlined_call_operand.hbm [shape: f32[8,256], index: 1, kind: output, shape index: {}]
  %s2 = sld [smem:[#allocation0]]
  $region18: #{tpu_custom_call.1} parent=0
    _
  %s4 = ssub.s32 1, %s2
  %s5 = scalar_select 0, %s4, %s2
  $region1: #{tpu_custom_call.1} parent=0
    #allocation2 [shape = 'u8[8192]{0}', space=vmem, size = 0x2000, scoped, tag = 'input window, operand 0, single buffered']
    #allocation3 [shape = 's32[1]{0}', space=sflag, size = 0x4, scoped, tag = 'scoped memory for tpu_custom_call.1']
    #allocation4 [shape = 's32[1]{0}', space=sflag, size = 0x4, scoped, tag = 'scoped memory for tpu_custom_call.1']
    #allocation5 [shape = 'u8[8192]{0}', space=vmem, size = 0x2000, scoped, tag = 'output window, operand 0, single buffered']
    %6 = vsyncpa [#allocation3], 0
    %7 = vsyncpa [#allocation4], 0
    // Predicated region
    $region2: #{tpu_custom_call.1} parent=1 // pred_check
      _
    $region3: #{tpu_custom_call.1} parent=1 // pred_check_branch
      %9 = sbr.rel (0) target = $region5
    $region4: #{tpu_custom_call.1} parent=1 // pred_region
      %11 = vsyncadd [#allocation3], 0
      %s13 = sshll.u32 %s0, 4
      %s14 = int_to_ptr.hbm [resolvable:$true] %s13
      %s15 = sshll.u32 [#allocation2], 4
      %s16 = int_to_ptr.vmem [resolvable:$true] %s15
      %18 = dma.hbm_to_vmem [thread:$0]  %s14, 256, %s16, [#allocation3]
    $region5: #{tpu_custom_call.1} parent=1 // pred_fallthru
      _
    // Predicated region
    $region6: #{tpu_custom_call.1} parent=1 // pred_check
      _
    $region7: #{tpu_custom_call.1} parent=1 // pred_check_branch
      %20 = sbr.rel (0) target = $region9
    $region8: #{tpu_custom_call.1} parent=1 // pred_region
      %22 = dma.done [#allocation3], 256
    $region9: #{tpu_custom_call.1} parent=1 // pred_fallthru
      _
    %s23 = smul.u32 0, 2
    %s24 = smul.addr %s23, 8
    %s25 = scalar_lea.vmem [#allocation2], %s24
    %v26 = vld [vmem:[%s25] sm:$0xff]
    %v27 = vld [vmem:[%s25 + $0x8] sm:$0xff]
    %v28 = vand.u32 2147483647, %v26
    %vm29 = vcmp.le.f32.partialorder %v28, 0.7853982
    %vm30 = vcmp.lt.s32.totalorder %v26, 0
    %v31 = vand.u32 %v26, 2139095040
    %v32 = vshrl.u32 %v31, 23
    %v33 = vsub.s32 %v32, 127
    %v34 = vand.u32 2147483647, %v26
    %v35 = vand.u32 %v34, 8388607
    %v36 = vor.u32 %v35, 8388608
    %v37 = vsub.s32 0, %v36
    %v38 = vadd.s32 %v33, 1
    %vm39 = vcmp.gt.s32.totalorder %v38, 0
    %v40 = vsel %vm39, %v38, 0
    %v41 = vshrl.u32 %v40, 5
    %v42 = vand.u32 %v40, 31
    %v43 = vsub.s32 32, %v42
    %v44 = vshrl.u32 683565275, %v43
    %v45 = vshll.u32 683565275, %v42
    %v46 = vshrl.u32 2475754826, %v43
    %v47 = vor.u32 %v45, %v46
    %v48 = vshll.u32 2475754826, %v42
    %v49 = vshrl.u32 2131351028, %v43
    %v50 = vor.u32 %v48, %v49
    %v51 = vshll.u32 2131351028, %v42
    %v52 = vshrl.u32 2102212464, %v43
    %v53 = vor.u32 %v51, %v52
    %v54 = vshll.u32 2102212464, %v42
    %v55 = vshrl.u32 920167782, %v43
    %v56 = vor.u32 %v54, %v55
    %v57 = vshll.u32 920167782, %v42
    %v58 = vshrl.u32 1326507024, %v43
    %v59 = vor.u32 %v57, %v58
    %vm60 = vcmp.lt.s32.totalorder %v41, 1
    %vm61 = vcmp.lt.s32.totalorder %v41, 2
    %vm62 = vcmp.lt.s32.totalorder %v41, 3
    %vm63 = vcmp.lt.s32.totalorder %v41, 4
    %v64 = vsel %vm60, %v44, %v47
    %v65 = vsel %vm63, %v53, 2102212464
    %v66 = vsel %vm62, %v50, %v65
    %v67 = vsel %vm61, %v64, %v66
    %v68 = vsel %vm60, %v47, %v50
    %v69 = vsel %vm63, %v56, 920167782
    %v70 = vsel %vm62, %v53, %v69
    %v71 = vsel %vm61, %v68, %v70
    %v72 = vsel %vm60, %v50, %v53
    %v73 = vsel %vm63, %v59, 1326507024
    %v74 = vsel %vm62, %v56, %v73
    %v75 = vsel %vm61, %v72, %v74
    %v76 = vshll.u32 %v36, 8
    %v77 = vand.u32 %v76, 65535
    %v78 = vshrl.u32 %v76, 16
    %v79 = vand.u32 %v75, 65535
    %v80 = vshrl.u32 %v75, 16
    %v81 = vmul.u32 %v77, %v79
    %v82 = vmul.u32 %v77, %v80
    %v83 = vmul.u32 %v78, %v79
    %v84 = vmul.u32 %v78, %v80
    %v85 = vshll.u32 %v82, 16
    %v86 = vshrl.u32 %v82, 16
    %v87 = vshll.u32 %v83, 16
    %v88 = vshrl.u32 %v83, 16
    %vm89 = vc.u32 %v81, %v85
    %v90 = vsel %vm89, 1, 0
    %v91 = vadd.s32 %v81, %v85
    %v92 = vadd.s32 %v84, %v90
    %vm93 = vc.u32 %v91, %v87
    %v94 = vsel %vm93, 1, 0
    %v95 = vadd.s32 %v91, %v87
    %v96 = vadd.s32 %v92, %v94
    %v97 = vadd.s32 %v96, %v86
    %v98 = vadd.s32 %v97, %v88
    %v99 = vand.u32 %v76, 65535
    %v100 = vshrl.u32 %v76, 16
    %v101 = vand.u32 %v71, 65535
    %v102 = vshrl.u32 %v71, 16
    %v103 = vmul.u32 %v99, %v101
    %v104 = vmul.u32 %v99, %v102
    %v105 = vmul.u32 %v100, %v101
    %v106 = vmul.u32 %v100, %v102
    %v107 = vshll.u32 %v104, 16
    %v108 = vshrl.u32 %v104, 16
    %v109 = vshll.u32 %v105, 16
    %v110 = vshrl.u32 %v105, 16
    %vm111 = vc.u32 %v103, %v107
    %v112 = vsel %vm111, 1, 0
    %v113 = vadd.s32 %v103, %v107
    %v114 = vadd.s32 %v106, %v112
    %vm115 = vc.u32 %v113, %v109
    %v116 = vsel %vm115, 1, 0
    %v117 = vadd.s32 %v113, %v109
    %v118 = vadd.s32 %v114, %v116
    %v119 = vadd.s32 %v118, %v108
    %v120 = vadd.s32 %v119, %v110
    %v121 = vmul.u32 %v76, %v67
    %v122 = vadd.s32 %v98, %v117
    %vm123 = vc.u32 %v98, %v117
    %v124 = vadd.s32 %v120, 1
    %v125 = vsel %vm123, %v124, %v120
    %v126 = vadd.s32 %v121, %v125
    %v127 = vadd.s32 %v126, 536870912
    %v128 = vshrl.u32 %v127, 30
    %v129 = vshll.u32 %v128, 30
    %v130 = vsub.s32 %v126, %v129
    %vm131 = vcmp.lt.s32.totalorder %v130, 0
    %v132 = vsub.s32 0, %v130
    %v133 = vsel %vm131, %v132, %v130
    %v134 = vclz %v133
    %v135 = vsub.s32 %v134, 2
    %vm136 = vcmp.gt.s32.totalorder 0, %v135
    %v137 = vsel %vm136, 0, %v135
    %v138 = vsub.s32 32, %v137
    %v139 = vshll.u32 %v130, %v137
    %v140 = vshrl.u32 %v122, %v138
    %v141 = vor.u32 %v139, %v140
    %v142 = vsub.s32 4294967266, %v137
    %v143 = vadd.s32 %v142, 127
    %v144 = vshll.u32 %v143, 23
    %v145 = vor.u32 4788187, %v144
    %v146 = vand.u32 2147483647, %v145
    %v148 = vcvt.s32.f32 %v141
    %v149 = vmul.f32 %v148, %v146
    %v150 = vxor.u32 %v149, 2147483648
    %v151 = vsel %vm30, %v150, %v149
    %v152 = vsub.s32 4, %v128
    %v153 = vsel %vm30, %v152, %v128
    %v154 = vsel %vm29, %v26, %v151
    %v155 = vsel %vm29, 0, %v153
    %v156 = vmul.f32 %v154, %v154
    %v157 = vmul.f32 %v156, -0.001358992
    %v158 = vadd.f32 %v157, 0.041655596
    %v159 = vmul.f32 %v156, %v158
    %v160 = vadd.f32 %v159, -0.4999988
    %v161 = vmul.f32 %v156, %v160
    %v162 = vadd.f32 1.0, %v161
    %v163 = vmul.f32 %v154, %v154
    %v164 = vmul.f32 %v163, -0.00019511016
    %v165 = vadd.f32 %v164, 0.008332121
    %v166 = vmul.f32 %v163, %v165
    %v167 = vadd.f32 %v166, -0.16666654
    %v168 = vmul.f32 %v163, %v167
    %v169 = vadd.f32 %v168, 1.0
    %v170 = vmul.f32 %v169, %v154
    %vm171 = vweird.f32 %v26
    %v172 = vand.u32 %v155, 3
    %vm173 = vcmp.lt.s32.totalorder %v172, 2
    %vm174 = vcmp.eq.s32.totalorder %v172, 0
    %v175 = vxor.u32 %v170, 2147483648
    %v176 = vsel %vm174, %v162, %v175
    %vm177 = vcmp.eq.s32.totalorder %v172, 2
    %v178 = vxor.u32 %v162, 2147483648
    %v179 = vsel %vm177, %v178, %v170
    %v180 = vsel %vm173, %v176, %v179
    %v181 = vsel %vm171, nan, %v180
    %v182 = vand.u32 2147483647, %v27
    %vm183 = vcmp.le.f32.partialorder %v182, 0.7853982
    %vm184 = vcmp.lt.s32.totalorder %v27, 0
    %v185 = vand.u32 %v27, 2139095040
    %v186 = vshrl.u32 %v185, 23
    %v187 = vsub.s32 %v186, 127
    %v188 = vand.u32 2147483647, %v27
    %v189 = vand.u32 %v188, 8388607
    %v190 = vor.u32 %v189, 8388608
    %v191 = vsub.s32 0, %v190
    %v192 = vadd.s32 %v187, 1
    %vm193 = vcmp.gt.s32.totalorder %v192, 0
    %v194 = vsel %vm193, %v192, 0
    %v195 = vshrl.u32 %v194, 5
    %v196 = vand.u32 %v194, 31
    %v197 = vsub.s32 32, %v196
    %v198 = vshrl.u32 683565275, %v197
    %v199 = vshll.u32 683565275, %v196
    %v200 = vshrl.u32 2475754826, %v197
    %v201 = vor.u32 %v199, %v200
    %v202 = vshll.u32 2475754826, %v196
    %v203 = vshrl.u32 2131351028, %v197
    %v204 = vor.u32 %v202, %v203
    %v205 = vshll.u32 2131351028, %v196
    %v206 = vshrl.u32 2102212464, %v197
    %v207 = vor.u32 %v205, %v206
    %v208 = vshll.u32 2102212464, %v196
    %v209 = vshrl.u32 920167782, %v197
    %v210 = vor.u32 %v208, %v209
    %v211 = vshll.u32 920167782, %v196
    %v212 = vshrl.u32 1326507024, %v197
    %v213 = vor.u32 %v211, %v212
    %vm214 = vcmp.lt.s32.totalorder %v195, 1
    %vm215 = vcmp.lt.s32.totalorder %v195, 2
    %vm216 = vcmp.lt.s32.totalorder %v195, 3
    %vm217 = vcmp.lt.s32.totalorder %v195, 4
    %v218 = vsel %vm214, %v198, %v201
    %v219 = vsel %vm217, %v207, 2102212464
    %v220 = vsel %vm216, %v204, %v219
    %v221 = vsel %vm215, %v218, %v220
    %v222 = vsel %vm214, %v201, %v204
    %v223 = vsel %vm217, %v210, 920167782
    %v224 = vsel %vm216, %v207, %v223
    %v225 = vsel %vm215, %v222, %v224
    %v226 = vsel %vm214, %v204, %v207
    %v227 = vsel %vm217, %v213, 1326507024
    %v228 = vsel %vm216, %v210, %v227
    %v229 = vsel %vm215, %v226, %v228
    %v230 = vshll.u32 %v190, 8
    %v231 = vand.u32 %v230, 65535
    %v232 = vshrl.u32 %v230, 16
    %v233 = vand.u32 %v229, 65535
    %v234 = vshrl.u32 %v229, 16
    %v235 = vmul.u32 %v231, %v233
    %v236 = vmul.u32 %v231, %v234
    %v237 = vmul.u32 %v232, %v233
    %v238 = vmul.u32 %v232, %v234
    %v239 = vshll.u32 %v236, 16
    %v240 = vshrl.u32 %v236, 16
    %v241 = vshll.u32 %v237, 16
    %v242 = vshrl.u32 %v237, 16
    %vm243 = vc.u32 %v235, %v239
    %v244 = vsel %vm243, 1, 0
    %v245 = vadd.s32 %v235, %v239
    %v246 = vadd.s32 %v238, %v244
    %vm247 = vc.u32 %v245, %v241
    %v248 = vsel %vm247, 1, 0
    %v249 = vadd.s32 %v245, %v241
    %v250 = vadd.s32 %v246, %v248
    %v251 = vadd.s32 %v250, %v240
    %v252 = vadd.s32 %v251, %v242
    %v253 = vand.u32 %v230, 65535
    %v254 = vshrl.u32 %v230, 16
    %v255 = vand.u32 %v225, 65535
    %v256 = vshrl.u32 %v225, 16
    %v257 = vmul.u32 %v253, %v255
    %v258 = vmul.u32 %v253, %v256
    %v259 = vmul.u32 %v254, %v255
    %v260 = vmul.u32 %v254, %v256
    %v261 = vshll.u32 %v258, 16
    %v262 = vshrl.u32 %v258, 16
    %v263 = vshll.u32 %v259, 16
    %v264 = vshrl.u32 %v259, 16
    %vm265 = vc.u32 %v257, %v261
    %v266 = vsel %vm265, 1, 0
    %v267 = vadd.s32 %v257, %v261
    %v268 = vadd.s32 %v260, %v266
    %vm269 = vc.u32 %v267, %v263
    %v270 = vsel %vm269, 1, 0
    %v271 = vadd.s32 %v267, %v263
    %v272 = vadd.s32 %v268, %v270
    %v273 = vadd.s32 %v272, %v262
    %v274 = vadd.s32 %v273, %v264
    %v275 = vmul.u32 %v230, %v221
    %v276 = vadd.s32 %v252, %v271
    %vm277 = vc.u32 %v252, %v271
    %v278 = vadd.s32 %v274, 1
    %v279 = vsel %vm277, %v278, %v274
    %v280 = vadd.s32 %v275, %v279
    %v281 = vadd.s32 %v280, 536870912
    %v282 = vshrl.u32 %v281, 30
    %v283 = vshll.u32 %v282, 30
    %v284 = vsub.s32 %v280, %v283
    %vm285 = vcmp.lt.s32.totalorder %v284, 0
    %v286 = vsub.s32 0, %v284
    %v287 = vsel %vm285, %v286, %v284
    %v288 = vclz %v287
    %v289 = vsub.s32 %v288, 2
    %vm290 = vcmp.gt.s32.totalorder 0, %v289
    %v291 = vsel %vm290, 0, %v289
    %v292 = vsub.s32 32, %v291
    %v293 = vshll.u32 %v284, %v291
    %v294 = vshrl.u32 %v276, %v292
    %v295 = vor.u32 %v293, %v294
    %v296 = vsub.s32 4294967266, %v291
    %v297 = vadd.s32 %v296, 127
    %v298 = vshll.u32 %v297, 23
    %v299 = vor.u32 4788187, %v298
    %v300 = vand.u32 2147483647, %v299
    %v302 = vcvt.s32.f32 %v295
    %v303 = vmul.f32 %v302, %v300
    %v304 = vxor.u32 %v303, 2147483648
    %v305 = vsel %vm184, %v304, %v303
    %v306 = vsub.s32 4, %v282
    %v307 = vsel %vm184, %v306, %v282
    %v308 = vsel %vm183, %v27, %v305
    %v309 = vsel %vm183, 0, %v307
    %v310 = vmul.f32 %v308, %v308
    %v311 = vmul.f32 %v310, -0.001358992
    %v312 = vadd.f32 %v311, 0.041655596
    %v313 = vmul.f32 %v310, %v312
    %v314 = vadd.f32 %v313, -0.4999988
    %v315 = vmul.f32 %v310, %v314
    %v316 = vadd.f32 1.0, %v315
    %v317 = vmul.f32 %v308, %v308
    %v318 = vmul.f32 %v317, -0.00019511016
    %v319 = vadd.f32 %v318, 0.008332121
    %v320 = vmul.f32 %v317, %v319
    %v321 = vadd.f32 %v320, -0.16666654
    %v322 = vmul.f32 %v317, %v321
    %v323 = vadd.f32 %v322, 1.0
    %v324 = vmul.f32 %v323, %v308
    %vm325 = vweird.f32 %v27
    %v326 = vand.u32 %v309, 3
    %vm327 = vcmp.lt.s32.totalorder %v326, 2
    %vm328 = vcmp.eq.s32.totalorder %v326, 0
    %v329 = vxor.u32 %v324, 2147483648
    %v330 = vsel %vm328, %v316, %v329
    %vm331 = vcmp.eq.s32.totalorder %v326, 2
    %v332 = vxor.u32 %v316, 2147483648
    %v333 = vsel %vm331, %v332, %v324
    %v334 = vsel %vm327, %v330, %v333
    %v335 = vsel %vm325, nan, %v334
    %v336 = vsub.f32 1.0, %v181
    %v337 = vsub.f32 1.0, %v335
    %v338 = vmul.f32 %v336, 0.5
    %v339 = vmul.f32 %v337, 0.5
    %v340 = vmul.f32 %v338, -0.006952736
    %v341 = vmul.f32 %v339, -0.006952736
    %v342 = vadd.f32 %v340, -0.007355129
    %v343 = vadd.f32 %v341, -0.007355129
    %v344 = vmul.f32 %v342, %v338
    %v345 = vmul.f32 %v343, %v339
    %v346 = vadd.f32 %v344, -0.007806918
    %v347 = vadd.f32 %v345, -0.007806918
    %v348 = vmul.f32 %v346, %v338
    %v349 = vmul.f32 %v347, %v339
    %v350 = vadd.f32 %v348, -0.008317785
    %v351 = vadd.f32 %v349, -0.008317785
    %v352 = vmul.f32 %v350, %v338
    %v353 = vmul.f32 %v351, %v339
    %v354 = vadd.f32 %v352, -0.008900117
    %v355 = vadd.f32 %v353, -0.008900117
    %v356 = vmul.f32 %v354, %v338
    %v357 = vmul.f32 %v355, %v339
    %v358 = vadd.f32 %v356, -0.009570018
    %v359 = vadd.f32 %v357, -0.009570018
    %v360 = vmul.f32 %v358, %v338
    %v361 = vmul.f32 %v359, %v339
    %v362 = vadd.f32 %v360, -0.01034882
    %v363 = vadd.f32 %v361, -0.01034882
    %v364 = vmul.f32 %v362, %v338
    %v365 = vmul.f32 %v363, %v339
    %v366 = vadd.f32 %v364, -0.011265382
    %v367 = vadd.f32 %v365, -0.011265382
    %v368 = vmul.f32 %v366, %v338
    %v369 = vmul.f32 %v367, %v339
    %v370 = vadd.f32 %v368, -0.012359734
    %v371 = vadd.f32 %v369, -0.012359734
    %v372 = vmul.f32 %v370, %v338
    %v373 = vmul.f32 %v371, %v339
    %v374 = vadd.f32 %v372, -0.013689041
    %v375 = vadd.f32 %v373, -0.013689041
    %v376 = vmul.f32 %v374, %v338
    %v377 = vmul.f32 %v375, %v339
    %v378 = vadd.f32 %v376, -0.015337861
    %v379 = vadd.f32 %v377, -0.015337861
    %v380 = vmul.f32 %v378, %v338
    %v381 = vmul.f32 %v379, %v339
    %v382 = vadd.f32 %v380, -0.017436726
    %v383 = vadd.f32 %v381, -0.017436726
    %v384 = vmul.f32 %v382, %v338
    %v385 = vmul.f32 %v383, %v339
    %v386 = vadd.f32 %v384, -0.0201982
    %v387 = vadd.f32 %v385, -0.0201982
    %v388 = vmul.f32 %v386, %v338
    %v389 = vmul.f32 %v387, %v339
    %v390 = vadd.f32 %v388, -0.023993012
    %v391 = vadd.f32 %v389, -0.023993012
    %v392 = vmul.f32 %v390, %v338
    %v393 = vmul.f32 %v391, %v339
    %v394 = vadd.f32 %v392, -0.029529862
    %v395 = vadd.f32 %v393, -0.029529862
    %v396 = vmul.f32 %v394, %v338
    %v397 = vmul.f32 %v395, %v339
    %v398 = vadd.f32 %v396, -0.03835047
    %v399 = vadd.f32 %v397, -0.03835047
    %v400 = vmul.f32 %v398, %v338
    %v401 = vmul.f32 %v399, %v339
    %v402 = vadd.f32 %v400, -0.05454289
    %v403 = vadd.f32 %v401, -0.05454289
    %v404 = vmul.f32 %v402, %v338
    %v405 = vmul.f32 %v403, %v339
    %v406 = vadd.f32 %v404, -0.0935021
    %v407 = vadd.f32 %v405, -0.0935021
    %v408 = vmul.f32 %v406, %v338
    %v409 = vmul.f32 %v407, %v339
    %v410 = vadd.f32 %v408, -0.2992067
    %v411 = vadd.f32 %v409, -0.2992067
    %v412 = vmul.f32 %v410, %v338
    %v413 = vmul.f32 %v411, %v339
    %v414 = vadd.f32 %v412, 0.3989423
    %v415 = vadd.f32 %v413, 0.3989423
    %s416 = smul.addr %s23, 8
    %s417 = scalar_lea.vmem [#allocation5], %s416
    %418 = vst [vmem:[%s417] sm:$0xff] %v414
    %419 = vst [vmem:[%s417 + $0x8] sm:$0xff] %v415
    // Predicated region
    $region10: #{tpu_custom_call.1} parent=1 // pred_check
      _
    $region11: #{tpu_custom_call.1} parent=1 // pred_check_branch
      %421 = sbr.rel (0) target = $region13
    $region12: #{tpu_custom_call.1} parent=1 // pred_region
      %423 = vsyncadd [#allocation4], 0
      %s425 = sshll.u32 [#allocation5], 4
      %s426 = int_to_ptr.vmem [resolvable:$true] %s425
      %s427 = sshll.u32 %s1, 4
      %s428 = int_to_ptr.hbm [resolvable:$true] %s427
      %430 = dma.vmem_to_hbm [thread:$0]  %s426, 256, %s428, [#allocation4]
    $region13: #{tpu_custom_call.1} parent=1 // pred_fallthru
      _
    // Predicated region
    $region14: #{tpu_custom_call.1} parent=1 // pred_check
      _
    $region15: #{tpu_custom_call.1} parent=1 // pred_check_branch
      %432 = sbr.rel (0) target = $region17
    $region16: #{tpu_custom_call.1} parent=1 // pred_region
      %434 = dma.done [#allocation4], 256
    $region17: #{tpu_custom_call.1} parent=1 // pred_fallthru
      _
    %435 = vsyncpa [#allocation3], 1
    %436 = vsyncpa [#allocation4], 1

</llo_original>
